<compile_context>
chip_gen: v6e
topology: v6e:2x2x1
jax: 0.10.0
libtpu: 0.0.40
codegen_flags: <defaults>
</compile_context>

<pallas_src>
import jax
import jax.numpy as jnp
from jax.experimental import pallas as pl
from jax.experimental.pallas import tpu as pltpu

IN_FEATURES = 28 * 28   # 784
OUT_FEATURES = 10
N_PAD = 128             # lane-dense output width (multiple of 128)


def _round_up(x, m):
    return ((x + m - 1) // m) * m


def linear_kernel(x_ref, w_ref, b_ref, o_ref):
    # x_ref: (TM, 784) bf16, w_ref: (128, 784) bf16 (rows 10..127 are zero),
    # b_ref: (1, 128) f32,   o_ref: (TM, 128) f32
    acc = jax.lax.dot_general(
        x_ref[...], w_ref[...],
        dimension_numbers=(((1,), (1,)), ((), ())),   # contract minor dims
        preferred_element_type=jnp.float32)
    o_ref[...] = (acc + b_ref[...]).astype(o_ref.dtype)


def dummy_target_model(x, weight, bias, *, tm=512):
    """x: (B, 1, 28, 28) float32 (NCHW). weight: (10, 784), bias: (10,).

    Matches torch.nn.Linear semantics: y = x_flat @ weight.T + bias
    """
    B = x.shape[0]
    x_flat = x.reshape(B, IN_FEATURES)

    # Batch tile size: at most `tm`, at least the (sublane-aligned) batch.
    TM = min(tm, _round_up(B, 8))
    B_pad = _round_up(B, TM)
    if B_pad != B:
        x_flat = jnp.pad(x_flat, ((0, B_pad - B), (0, 0)))
    x_bf16 = x_flat.astype(jnp.bfloat16)

    # One-time prep: zero-pad output dim 10 -> 128 (lane-dense store) and cast
    # weight to bf16. No HBM transpose — kernel contracts on the minor dim.
    w_pad = jnp.zeros((N_PAD, IN_FEATURES), jnp.bfloat16)
    w_pad = w_pad.at[:OUT_FEATURES, :].set(weight.astype(jnp.bfloat16))
    b_pad = jnp.zeros((1, N_PAD), jnp.float32)
    b_pad = b_pad.at[0, :OUT_FEATURES].set(bias.astype(jnp.float32))

    out_padded = pl.pallas_call(
        linear_kernel,
        out_shape=jax.ShapeDtypeStruct((B_pad, N_PAD), jnp.float32),
        grid_spec=pltpu.PrefetchScalarGridSpec(
            num_scalar_prefetch=0,
            grid=(B_pad // TM,),
            in_specs=[
                pl.BlockSpec((TM, IN_FEATURES), lambda i: (i, 0)),       # x tile
                pl.BlockSpec((N_PAD, IN_FEATURES), lambda i: (0, 0)),    # resident W
                pl.BlockSpec((1, N_PAD), lambda i: (0, 0)),              # resident b
            ],
            out_specs=pl.BlockSpec((TM, N_PAD), lambda i: (i, 0)),
        ),
        compiler_params=pltpu.CompilerParams(
            dimension_semantics=("parallel",),
        ),
    )(x_bf16, w_pad, b_pad)

    return out_padded[:B, :OUT_FEATURES]


if __name__ == "__main__":
    # Deterministic parameter init (shapes from nn.Linear(784, 10)).
    wkey, bkey = jax.random.split(jax.random.PRNGKey(42))
    bound = 1.0 / (IN_FEATURES ** 0.5)  # PyTorch Linear default init range
    weight = jax.random.uniform(
        wkey, (OUT_FEATURES, IN_FEATURES), jnp.float32, -bound, bound)
    bias = jax.random.uniform(
        bkey, (OUT_FEATURES,), jnp.float32, -bound, bound)

    # Deterministic example input: batch=2, MNIST-shaped NCHW.
    x = jax.random.normal(jax.random.PRNGKey(0), (2, 1, 28, 28), jnp.float32)

    out = dummy_target_model(x, weight, bias)
    out = jax.block_until_ready(out)

    # Sanity check against plain-JAX f32 reference (loose tol: bf16 matmul).
    ref = x.reshape(2, -1) @ weight.T + bias
    assert out.shape == (2, OUT_FEATURES)
    assert jnp.allclose(out, ref, atol=5e-2, rtol=5e-2), (
        f"max abs err = {jnp.max(jnp.abs(out - ref))}")
    print("KERNEL_OK")
</pallas_src>

<mosaic_0001>
module attributes {stable_mosaic.version = 11 : i64} {
  func.func @linear_kernel(%arg0: i32, %arg1: memref<8x784xbf16, #tpu.memory_space<vmem>>, %arg2: memref<128x784xbf16, #tpu.memory_space<vmem>>, %arg3: memref<1x128xf32, #tpu.memory_space<vmem>>, %arg4: memref<8x128xf32, #tpu.memory_space<vmem>>) attributes {dimension_semantics = [#tpu.dimension_semantics<parallel>], iteration_bounds = array<i64: 1>, scalar_prefetch = 0 : i64, scratch_operands = 0 : i64, tpu.core_type = #tpu.core_type<tc>, window_params = [{transform_indices = @transform_0, window_bounds = array<i64: 8, 784>}, {pipeline_mode = #tpu.pipeline_mode<synchronous>, transform_indices = @transform_1, window_bounds = array<i64: 128, 784>}, {pipeline_mode = #tpu.pipeline_mode<synchronous>, transform_indices = @transform_2, window_bounds = array<i64: 1, 128>}, {transform_indices = @transform_3, window_bounds = array<i64: 8, 128>}]} {
    %c0 = arith.constant 0 : index
    %c0_0 = arith.constant 0 : index
    %0 = vector.load %arg1[%c0, %c0_0] : memref<8x784xbf16, #tpu.memory_space<vmem>>, vector<8x784xbf16>
    %c0_1 = arith.constant 0 : index
    %c0_2 = arith.constant 0 : index
    %1 = vector.load %arg2[%c0_1, %c0_2] : memref<128x784xbf16, #tpu.memory_space<vmem>>, vector<128x784xbf16>
    %cst = arith.constant dense<0.000000e+00> : vector<8x128xf32>
    %2 = tpu.matmul %0, %1, %cst {dimension_numbers = #tpu.dot_dimension_numbers<[1], [1], [0], [0], [0, 0, 1, 0], [], []>} : vector<8x784xbf16>, vector<128x784xbf16>, vector<8x128xf32> -> vector<8x128xf32>
    %c0_3 = arith.constant 0 : index
    %c0_4 = arith.constant 0 : index
    %3 = vector.load %arg3[%c0_3, %c0_4] : memref<1x128xf32, #tpu.memory_space<vmem>>, vector<1x128xf32>
    %4 = vector.broadcast %3 : vector<1x128xf32> to vector<8x128xf32>
    %5 = arith.addf %2, %4 : vector<8x128xf32>
    %c0_5 = arith.constant 0 : index
    %c0_6 = arith.constant 0 : index
    %6 = vector.load %arg4[%c0_5, %c0_6] : memref<8x128xf32, #tpu.memory_space<vmem>>, vector<8x128xf32>
    tpu.vector_store %arg4[%c0_5, %c0_6], %5 {strides = array<i32>} : memref<8x128xf32, #tpu.memory_space<vmem>>, vector<8x128xf32>,
    return
  }
  func.func @transform_0(%arg0: i32) -> (i32, i32) {
    %c0_i32 = arith.constant 0 : i32
    %c0_i32_0 = arith.constant 0 : i32
    return %arg0, %c0_i32 : i32, i32
  }
  func.func @transform_1(%arg0: i32) -> (i32, i32) {
    %c0_i32 = arith.constant 0 : i32
    %c0_i32_0 = arith.constant 0 : i32
    %c0_i32_1 = arith.constant 0 : i32
    return %c0_i32, %c0_i32_0 : i32, i32
  }
  func.func @transform_2(%arg0: i32) -> (i32, i32) {
    %c0_i32 = arith.constant 0 : i32
    %c0_i32_0 = arith.constant 0 : i32
    %c0_i32_1 = arith.constant 0 : i32
    return %c0_i32, %c0_i32_0 : i32, i32
  }
  func.func @transform_3(%arg0: i32) -> (i32, i32) {
    %c0_i32 = arith.constant 0 : i32
    %c0_i32_0 = arith.constant 0 : i32
    return %arg0, %c0_i32 : i32, i32
  }
}

</mosaic_0001>

<llo_original>
// kernel: tpu_custom_call.1
$region0: #{tpu_custom_call.1}
  #allocation0 [shape = 'u32[]', space=smem, size = 0x4, offset = 0x4, fixed_abs, tag = 'smem constant byte address 0x4 - core index']
  #allocation1 [shape = 'u32[144,128]{1,0:T(1,128)}', space=vmem, size = 0x12000, scoped, tag = 'internal scratch']
  %s0 = inlined_call_operand.vmem [shape: bf16[8,784], index: 0, kind: input, shape index: {}]
  %s1 = inlined_call_operand.vmem [shape: bf16[128,784], index: 1, kind: input, shape index: {}]
  %s2 = inlined_call_operand.vmem [shape: f32[1,128], index: 2, kind: input, shape index: {}]
  %s3 = inlined_call_operand.hbm [shape: f32[8,128], index: 3, kind: output, shape index: {}]
  %s4 = sld [smem:[#allocation0]]
  $region22: #{tpu_custom_call.1} parent=0
    _
  %s6 = ssub.s32 1, %s4
  %s7 = scalar_select 0, %s6, %s4
  $region1: #{tpu_custom_call.1} parent=0
    #allocation2 [shape = 'u8[4096]{0}', space=vmem, size = 0x1000, scoped, tag = 'output window, operand 0, single buffered']
    #allocation3 [shape = 's32[1]{0}', space=sflag, size = 0x4, scoped, tag = 'scoped memory for tpu_custom_call.1']
    %8 = vsyncpa [#allocation3], 0
    // Predicated region
    $region2: #{tpu_custom_call.1} parent=1 // pred_check
      _
    $region3: #{tpu_custom_call.1} parent=1 // pred_check_branch
      %10 = sbr.rel (0) target = $region5
    $region4: #{tpu_custom_call.1} parent=1 // pred_region
      _
    $region5: #{tpu_custom_call.1} parent=1 // pred_fallthru
      _
    // Predicated region
    $region6: #{tpu_custom_call.1} parent=1 // pred_check
      _
    $region7: #{tpu_custom_call.1} parent=1 // pred_check_branch
      %12 = sbr.rel (0) target = $region9
    $region8: #{tpu_custom_call.1} parent=1 // pred_region
      _
    $region9: #{tpu_custom_call.1} parent=1 // pred_fallthru
      _
    // Predicated region
    $region10: #{tpu_custom_call.1} parent=1 // pred_check
      _
    $region11: #{tpu_custom_call.1} parent=1 // pred_check_branch
      %14 = sbr.rel (0) target = $region13
    $region12: #{tpu_custom_call.1} parent=1 // pred_region
      _
    $region13: #{tpu_custom_call.1} parent=1 // pred_fallthru
      _
    %v16 = vld [vmem:[%s0] sm:$0xff]
    %v17 = vld [vmem:[%s0 + $0x8] sm:$0xff]
    %v18 = vld [vmem:[%s0 + $0x10] sm:$0xff]
    %v19 = vld [vmem:[%s0 + $0x18] sm:$0xf]
    %v20 = vld [vmem:[%s1] sm:$0xff]
    %v21 = vld [vmem:[%s1 + $0x8] sm:$0xff]
    %v22 = vld [vmem:[%s1 + $0x10] sm:$0xff]
    %v23 = vld [vmem:[%s1 + $0x18] sm:$0xf]
    %v24 = vld [vmem:[%s1 + $0x1c] sm:$0xff]
    %v25 = vld [vmem:[%s1 + $0x24] sm:$0xff]
    %v26 = vld [vmem:[%s1 + $0x2c] sm:$0xff]
    %v27 = vld [vmem:[%s1 + $0x34] sm:$0xf]
    %v28 = vld [vmem:[%s1 + $0x38] sm:$0xff]
    %v29 = vld [vmem:[%s1 + $0x40] sm:$0xff]
    %v30 = vld [vmem:[%s1 + $0x48] sm:$0xff]
    %v31 = vld [vmem:[%s1 + $0x50] sm:$0xf]
    %v32 = vld [vmem:[%s1 + $0x54] sm:$0xff]
    %v33 = vld [vmem:[%s1 + $0x5c] sm:$0xff]
    %v34 = vld [vmem:[%s1 + $0x64] sm:$0xff]
    %v35 = vld [vmem:[%s1 + $0x6c] sm:$0xf]
    %v36 = vld [vmem:[%s1 + $0x70] sm:$0xff]
    %v37 = vld [vmem:[%s1 + $0x78] sm:$0xff]
    %v38 = vld [vmem:[%s1 + $0x80] sm:$0xff]
    %v39 = vld [vmem:[%s1 + $0x88] sm:$0xf]
    %v40 = vld [vmem:[%s1 + $0x8c] sm:$0xff]
    %v41 = vld [vmem:[%s1 + $0x94] sm:$0xff]
    %v42 = vld [vmem:[%s1 + $0x9c] sm:$0xff]
    %v43 = vld [vmem:[%s1 + $0xa4] sm:$0xf]
    %v44 = vld [vmem:[%s1 + $0xa8] sm:$0xff]
    %v45 = vld [vmem:[%s1 + $0xb0] sm:$0xff]
    %v46 = vld [vmem:[%s1 + $0xb8] sm:$0xff]
    %v47 = vld [vmem:[%s1 + $0xc0] sm:$0xf]
    %v48 = vld [vmem:[%s1 + $0xc4] sm:$0xff]
    %v49 = vld [vmem:[%s1 + $0xcc] sm:$0xff]
    %v50 = vld [vmem:[%s1 + $0xd4] sm:$0xff]
    %v51 = vld [vmem:[%s1 + $0xdc] sm:$0xf]
    %v52 = vld [vmem:[%s1 + $0xe0] sm:$0xff]
    %v53 = vld [vmem:[%s1 + $0xe8] sm:$0xff]
    %v54 = vld [vmem:[%s1 + $0xf0] sm:$0xff]
    %v55 = vld [vmem:[%s1 + $0xf8] sm:$0xf]
    %v56 = vld [vmem:[%s1 + $0xfc] sm:$0xff]
    %v57 = vld [vmem:[%s1 + $0x104] sm:$0xff]
    %v58 = vld [vmem:[%s1 + $0x10c] sm:$0xff]
    %v59 = vld [vmem:[%s1 + $0x114] sm:$0xf]
    %v60 = vld [vmem:[%s1 + $0x118] sm:$0xff]
    %v61 = vld [vmem:[%s1 + $0x120] sm:$0xff]
    %v62 = vld [vmem:[%s1 + $0x128] sm:$0xff]
    %v63 = vld [vmem:[%s1 + $0x130] sm:$0xf]
    %v64 = vld [vmem:[%s1 + $0x134] sm:$0xff]
    %v65 = vld [vmem:[%s1 + $0x13c] sm:$0xff]
    %v66 = vld [vmem:[%s1 + $0x144] sm:$0xff]
    %v67 = vld [vmem:[%s1 + $0x14c] sm:$0xf]
    %v68 = vld [vmem:[%s1 + $0x150] sm:$0xff]
    %v69 = vld [vmem:[%s1 + $0x158] sm:$0xff]
    %v70 = vld [vmem:[%s1 + $0x160] sm:$0xff]
    %v71 = vld [vmem:[%s1 + $0x168] sm:$0xf]
    %v72 = vld [vmem:[%s1 + $0x16c] sm:$0xff]
    %v73 = vld [vmem:[%s1 + $0x174] sm:$0xff]
    %v74 = vld [vmem:[%s1 + $0x17c] sm:$0xff]
    %v75 = vld [vmem:[%s1 + $0x184] sm:$0xf]
    %v76 = vld [vmem:[%s1 + $0x188] sm:$0xff]
    %v77 = vld [vmem:[%s1 + $0x190] sm:$0xff]
    %v78 = vld [vmem:[%s1 + $0x198] sm:$0xff]
    %v79 = vld [vmem:[%s1 + $0x1a0] sm:$0xf]
    %v80 = vld [vmem:[%s1 + $0x1a4] sm:$0xff]
    %v81 = vld [vmem:[%s1 + $0x1ac] sm:$0xff]
    %v82 = vld [vmem:[%s1 + $0x1b4] sm:$0xff]
    %v83 = vld [vmem:[%s1 + $0x1bc] sm:$0xf]
    %v84 = vld [vmem:[%s2] sm:$0x1]
    %v86 = vlaneseq
    %v87 = vshrl.u32 %v86, 7
    %v88 = vsub.s32 0, %v87
    %v89 = vrot.slane %v84, %v88
    %v95 = vunpack.c.l.b16 %v16
    %v96 = vunpack.c.h.b16 %v16
    %v97 = vunpack.c.l.b16 %v17
    %v98 = vunpack.c.h.b16 %v17
    %v99 = vunpack.c.l.b16 %v18
    %v100 = vunpack.c.h.b16 %v18
    %v101 = vunpack.c.l.b16 %v19
    %v102 = vpack.c.b16 %v95, %v95
    %v103 = vpack.c.b16 %v96, %v96
    %v104 = vpack.c.b16 %v97, %v97
    %v105 = vpack.c.b16 %v98, %v98
    %v106 = vpack.c.b16 %v99, %v99
    %v107 = vpack.c.b16 %v100, %v100
    %v108 = vpack.c.b16 %v101, %v101
    %v179 = vunpack.c.l.b16 %v20
    %v180 = vunpack.c.h.b16 %v20
    %v181 = vunpack.c.l.b16 %v21
    %v182 = vunpack.c.h.b16 %v21
    %v183 = vunpack.c.l.b16 %v22
    %v184 = vunpack.c.h.b16 %v22
    %v185 = vunpack.c.l.b16 %v23
    %v186 = vunpack.c.l.b16 %v24
    %v187 = vunpack.c.h.b16 %v24
    %v188 = vunpack.c.l.b16 %v25
    %v189 = vunpack.c.h.b16 %v25
    %v190 = vunpack.c.l.b16 %v26
    %v191 = vunpack.c.h.b16 %v26
    %v192 = vunpack.c.l.b16 %v27
    %v193 = vunpack.c.l.b16 %v28
    %v194 = vunpack.c.h.b16 %v28
    %v195 = vunpack.c.l.b16 %v29
    %v196 = vunpack.c.h.b16 %v29
    %v197 = vunpack.c.l.b16 %v30
    %v198 = vunpack.c.h.b16 %v30
    %v199 = vunpack.c.l.b16 %v31
    %v200 = vunpack.c.l.b16 %v32
    %v201 = vunpack.c.h.b16 %v32
    %v202 = vunpack.c.l.b16 %v33
    %v203 = vunpack.c.h.b16 %v33
    %v204 = vunpack.c.l.b16 %v34
    %v205 = vunpack.c.h.b16 %v34
    %v206 = vunpack.c.l.b16 %v35
    %v207 = vunpack.c.l.b16 %v36
    %v208 = vunpack.c.h.b16 %v36
    %v209 = vunpack.c.l.b16 %v37
    %v210 = vunpack.c.h.b16 %v37
    %v211 = vunpack.c.l.b16 %v38
    %v212 = vunpack.c.h.b16 %v38
    %v213 = vunpack.c.l.b16 %v39
    %v214 = vunpack.c.l.b16 %v40
    %v215 = vunpack.c.h.b16 %v40
    %v216 = vunpack.c.l.b16 %v41
    %v217 = vunpack.c.h.b16 %v41
    %v218 = vunpack.c.l.b16 %v42
    %v219 = vunpack.c.h.b16 %v42
    %v220 = vunpack.c.l.b16 %v43
    %v221 = vunpack.c.l.b16 %v44
    %v222 = vunpack.c.h.b16 %v44
    %v223 = vunpack.c.l.b16 %v45
    %v224 = vunpack.c.h.b16 %v45
    %v225 = vunpack.c.l.b16 %v46
    %v226 = vunpack.c.h.b16 %v46
    %v227 = vunpack.c.l.b16 %v47
    %v228 = vunpack.c.l.b16 %v48
    %v229 = vunpack.c.h.b16 %v48
    %v230 = vunpack.c.l.b16 %v49
    %v231 = vunpack.c.h.b16 %v49
    %v232 = vunpack.c.l.b16 %v50
    %v233 = vunpack.c.h.b16 %v50
    %v234 = vunpack.c.l.b16 %v51
    %v235 = vunpack.c.l.b16 %v52
    %v236 = vunpack.c.h.b16 %v52
    %v237 = vunpack.c.l.b16 %v53
    %v238 = vunpack.c.h.b16 %v53
    %v239 = vunpack.c.l.b16 %v54
    %v240 = vunpack.c.h.b16 %v54
    %v241 = vunpack.c.l.b16 %v55
    %v242 = vunpack.c.l.b16 %v56
    %v243 = vunpack.c.h.b16 %v56
    %v244 = vunpack.c.l.b16 %v57
    %v245 = vunpack.c.h.b16 %v57
    %v246 = vunpack.c.l.b16 %v58
    %v247 = vunpack.c.h.b16 %v58
    %v248 = vunpack.c.l.b16 %v59
    %v249 = vunpack.c.l.b16 %v60
    %v250 = vunpack.c.h.b16 %v60
    %v251 = vunpack.c.l.b16 %v61
    %v252 = vunpack.c.h.b16 %v61
    %v253 = vunpack.c.l.b16 %v62
    %v254 = vunpack.c.h.b16 %v62
    %v255 = vunpack.c.l.b16 %v63
    %v256 = vunpack.c.l.b16 %v64
    %v257 = vunpack.c.h.b16 %v64
    %v258 = vunpack.c.l.b16 %v65
    %v259 = vunpack.c.h.b16 %v65
    %v260 = vunpack.c.l.b16 %v66
    %v261 = vunpack.c.h.b16 %v66
    %v262 = vunpack.c.l.b16 %v67
    %v263 = vunpack.c.l.b16 %v68
    %v264 = vunpack.c.h.b16 %v68
    %v265 = vunpack.c.l.b16 %v69
    %v266 = vunpack.c.h.b16 %v69
    %v267 = vunpack.c.l.b16 %v70
    %v268 = vunpack.c.h.b16 %v70
    %v269 = vunpack.c.l.b16 %v71
    %v270 = vunpack.c.l.b16 %v72
    %v271 = vunpack.c.h.b16 %v72
    %v272 = vunpack.c.l.b16 %v73
    %v273 = vunpack.c.h.b16 %v73
    %v274 = vunpack.c.l.b16 %v74
    %v275 = vunpack.c.h.b16 %v74
    %v276 = vunpack.c.l.b16 %v75
    %v277 = vunpack.c.l.b16 %v76
    %v278 = vunpack.c.h.b16 %v76
    %v279 = vunpack.c.l.b16 %v77
    %v280 = vunpack.c.h.b16 %v77
    %v281 = vunpack.c.l.b16 %v78
    %v282 = vunpack.c.h.b16 %v78
    %v283 = vunpack.c.l.b16 %v79
    %v284 = vunpack.c.l.b16 %v80
    %v285 = vunpack.c.h.b16 %v80
    %v286 = vunpack.c.l.b16 %v81
    %v287 = vunpack.c.h.b16 %v81
    %v288 = vunpack.c.l.b16 %v82
    %v289 = vunpack.c.h.b16 %v82
    %v290 = vunpack.c.l.b16 %v83
    %v291 = vpack.c.b16 %v186, %v179
    %v292 = vpack.c.b16 %v187, %v180
    %v293 = vpack.c.b16 %v188, %v181
    %v294 = vpack.c.b16 %v189, %v182
    %v295 = vpack.c.b16 %v190, %v183
    %v296 = vpack.c.b16 %v191, %v184
    %v297 = vpack.c.b16 %v192, %v185
    %v298 = vpack.c.b16 %v200, %v193
    %v299 = vpack.c.b16 %v201, %v194
    %v300 = vpack.c.b16 %v202, %v195
    %v301 = vpack.c.b16 %v203, %v196
    %v302 = vpack.c.b16 %v204, %v197
    %v303 = vpack.c.b16 %v205, %v198
    %v304 = vpack.c.b16 %v206, %v199
    %v305 = vpack.c.b16 %v214, %v207
    %v306 = vpack.c.b16 %v215, %v208
    %v307 = vpack.c.b16 %v216, %v209
    %v308 = vpack.c.b16 %v217, %v210
    %v309 = vpack.c.b16 %v218, %v211
    %v310 = vpack.c.b16 %v219, %v212
    %v311 = vpack.c.b16 %v220, %v213
    %v312 = vpack.c.b16 %v228, %v221
    %v313 = vpack.c.b16 %v229, %v222
    %v314 = vpack.c.b16 %v230, %v223
    %v315 = vpack.c.b16 %v231, %v224
    %v316 = vpack.c.b16 %v232, %v225
    %v317 = vpack.c.b16 %v233, %v226
    %v318 = vpack.c.b16 %v234, %v227
    %v319 = vpack.c.b16 %v242, %v235
    %v320 = vpack.c.b16 %v243, %v236
    %v321 = vpack.c.b16 %v244, %v237
    %v322 = vpack.c.b16 %v245, %v238
    %v323 = vpack.c.b16 %v246, %v239
    %v324 = vpack.c.b16 %v247, %v240
    %v325 = vpack.c.b16 %v248, %v241
    %v326 = vpack.c.b16 %v256, %v249
    %v327 = vpack.c.b16 %v257, %v250
    %v328 = vpack.c.b16 %v258, %v251
    %v329 = vpack.c.b16 %v259, %v252
    %v330 = vpack.c.b16 %v260, %v253
    %v331 = vpack.c.b16 %v261, %v254
    %v332 = vpack.c.b16 %v262, %v255
    %v333 = vpack.c.b16 %v270, %v263
    %v334 = vpack.c.b16 %v271, %v264
    %v335 = vpack.c.b16 %v272, %v265
    %v336 = vpack.c.b16 %v273, %v266
    %v337 = vpack.c.b16 %v274, %v267
    %v338 = vpack.c.b16 %v275, %v268
    %v339 = vpack.c.b16 %v276, %v269
    %v340 = vpack.c.b16 %v284, %v277
    %v341 = vpack.c.b16 %v285, %v278
    %v342 = vpack.c.b16 %v286, %v279
    %v343 = vpack.c.b16 %v287, %v280
    %v344 = vpack.c.b16 %v288, %v281
    %v345 = vpack.c.b16 %v289, %v282
    %v346 = vpack.c.b16 %v290, %v283
    %vm395 = vcmask 130048
    %v397 = vsel %vm395, %v108, 0
    %v400 = vsel %vm395, %v297, 0
    %v403 = vsel %vm395, %v304, 0
    %v406 = vsel %vm395, %v311, 0
    %v409 = vsel %vm395, %v318, 0
    %v412 = vsel %vm395, %v325, 0
    %v415 = vsel %vm395, %v332, 0
    %v418 = vsel %vm395, %v339, 0
    %v421 = vsel %vm395, %v346, 0
    %423 = vmatprep.subr.bf16.mxu0 %v341
    %424 = vmatpush1.bf16.xpose.msra.mxu0 %v340
    %425 = vmatprep.subr.bf16.mxu0 %v334
    %426 = vmatpush1.bf16.xpose.msra.mxu0 %v333
    %427 = vmatprep.subr.bf16.mxu0 %v327
    %428 = vmatpush1.bf16.xpose.msra.mxu0 %v326
    %429 = vmatprep.subr.bf16.mxu0 %v320
    %430 = vmatpush1.bf16.xpose.msra.mxu0 %v319
    %431 = vmatprep.subr.bf16.mxu0 %v313
    %432 = vmatpush1.bf16.xpose.msra.mxu0 %v312
    %433 = vmatprep.subr.bf16.mxu0 %v306
    %434 = vmatpush1.bf16.xpose.msra.mxu0 %v305
    %435 = vmatprep.subr.bf16.mxu0 %v299
    %436 = vmatpush1.bf16.xpose.msra.mxu0 %v298
    %437 = vmatprep.subr.bf16.mxu0 %v292
    %438 = vmatpush1.bf16.xpose.msra.mxu0 %v291
    %439 = vmatprep.subr.bf16.mxu0 0
    %440 = vmatpush2.bf16.xpose.msra.mxu0 0
    %441 = vmatprep.subr.bf16.mxu0 0
    %442 = vmatpush2.bf16.xpose.msra.mxu0 0
    %443 = vmatprep.subr.bf16.mxu0 0
    %444 = vmatpush2.bf16.xpose.msra.mxu0 0
    %445 = vmatprep.subr.bf16.mxu0 0
    %446 = vmatpush2.bf16.xpose.msra.mxu0 0
    %447 = vmatprep.subr.bf16.mxu0 0
    %448 = vmatpush2.bf16.xpose.msra.mxu0 0
    %449 = vmatprep.subr.bf16.mxu0 0
    %450 = vmatpush2.bf16.xpose.msra.mxu0 0
    %451 = vmatprep.subr.bf16.mxu0 0
    %452 = vmatpush2.bf16.xpose.msra.mxu0 0
    %453 = vmatprep.subr.bf16.mxu0 0
    %454 = vmatpush2.bf16.xpose.msra.mxu0 0
    %455 = vmatprep.mubr.bf16.mxu0 %v103
    %456 = vmatmul.mubr.bf16.gmra.mxu0 %v102
    %v457 = vpop.f32.mrf.mxu0
    %v458 = vadd.f32 %v89, %v457
    %v459 = vpop.f32.mrf.mxu0
    %v460 = vpop.f32.mrf.mxu0
    %v461 = vpop.f32.mrf.mxu0
    %462 = vdwg.mxu0
    %463 = vmatprep.subr.bf16.mxu0 %v343
    %464 = vmatpush1.bf16.xpose.msra.mxu0 %v342
    %465 = vmatprep.subr.bf16.mxu0 %v336
    %466 = vmatpush1.bf16.xpose.msra.mxu0 %v335
    %467 = vmatprep.subr.bf16.mxu0 %v329
    %468 = vmatpush1.bf16.xpose.msra.mxu0 %v328
    %469 = vmatprep.subr.bf16.mxu0 %v322
    %470 = vmatpush1.bf16.xpose.msra.mxu0 %v321
    %471 = vmatprep.subr.bf16.mxu0 %v315
    %472 = vmatpush1.bf16.xpose.msra.mxu0 %v314
    %473 = vmatprep.subr.bf16.mxu0 %v308
    %474 = vmatpush1.bf16.xpose.msra.mxu0 %v307
    %475 = vmatprep.subr.bf16.mxu0 %v301
    %476 = vmatpush1.bf16.xpose.msra.mxu0 %v300
    %477 = vmatprep.subr.bf16.mxu0 %v294
    %478 = vmatpush1.bf16.xpose.msra.mxu0 %v293
    %479 = vmatprep.subr.bf16.mxu0 0
    %480 = vmatpush2.bf16.xpose.msra.mxu0 0
    %481 = vmatprep.subr.bf16.mxu0 0
    %482 = vmatpush2.bf16.xpose.msra.mxu0 0
    %483 = vmatprep.subr.bf16.mxu0 0
    %484 = vmatpush2.bf16.xpose.msra.mxu0 0
    %485 = vmatprep.subr.bf16.mxu0 0
    %486 = vmatpush2.bf16.xpose.msra.mxu0 0
    %487 = vmatprep.subr.bf16.mxu0 0
    %488 = vmatpush2.bf16.xpose.msra.mxu0 0
    %489 = vmatprep.subr.bf16.mxu0 0
    %490 = vmatpush2.bf16.xpose.msra.mxu0 0
    %491 = vmatprep.subr.bf16.mxu0 0
    %492 = vmatpush2.bf16.xpose.msra.mxu0 0
    %493 = vmatprep.subr.bf16.mxu0 0
    %494 = vmatpush2.bf16.xpose.msra.mxu0 0
    %495 = vmatprep.mubr.bf16.mxu0 %v105
    %496 = vmatmul.mubr.bf16.gmra.mxu0 %v104
    %v497 = vpop.f32.mrf.mxu0
    %v498 = vadd.f32 %v458, %v497
    %v499 = vpop.f32.mrf.mxu0
    %v500 = vpop.f32.mrf.mxu0
    %v501 = vpop.f32.mrf.mxu0
    %502 = vdwg.mxu0
    %503 = vmatprep.subr.bf16.mxu0 %v345
    %504 = vmatpush1.bf16.xpose.msra.mxu0 %v344
    %505 = vmatprep.subr.bf16.mxu0 %v338
    %506 = vmatpush1.bf16.xpose.msra.mxu0 %v337
    %507 = vmatprep.subr.bf16.mxu0 %v331
    %508 = vmatpush1.bf16.xpose.msra.mxu0 %v330
    %509 = vmatprep.subr.bf16.mxu0 %v324
    %510 = vmatpush1.bf16.xpose.msra.mxu0 %v323
    %511 = vmatprep.subr.bf16.mxu0 %v317
    %512 = vmatpush1.bf16.xpose.msra.mxu0 %v316
    %513 = vmatprep.subr.bf16.mxu0 %v310
    %514 = vmatpush1.bf16.xpose.msra.mxu0 %v309
    %515 = vmatprep.subr.bf16.mxu0 %v303
    %516 = vmatpush1.bf16.xpose.msra.mxu0 %v302
    %517 = vmatprep.subr.bf16.mxu0 %v296
    %518 = vmatpush1.bf16.xpose.msra.mxu0 %v295
    %519 = vmatprep.subr.bf16.mxu0 0
    %520 = vmatpush2.bf16.xpose.msra.mxu0 0
    %521 = vmatprep.subr.bf16.mxu0 0
    %522 = vmatpush2.bf16.xpose.msra.mxu0 0
    %523 = vmatprep.subr.bf16.mxu0 0
    %524 = vmatpush2.bf16.xpose.msra.mxu0 0
    %525 = vmatprep.subr.bf16.mxu0 0
    %526 = vmatpush2.bf16.xpose.msra.mxu0 0
    %527 = vmatprep.subr.bf16.mxu0 0
    %528 = vmatpush2.bf16.xpose.msra.mxu0 0
    %529 = vmatprep.subr.bf16.mxu0 0
    %530 = vmatpush2.bf16.xpose.msra.mxu0 0
    %531 = vmatprep.subr.bf16.mxu0 0
    %532 = vmatpush2.bf16.xpose.msra.mxu0 0
    %533 = vmatprep.subr.bf16.mxu0 0
    %534 = vmatpush2.bf16.xpose.msra.mxu0 0
    %535 = vmatprep.mubr.bf16.mxu0 %v107
    %536 = vmatmul.mubr.bf16.gmra.mxu0 %v106
    %v537 = vpop.f32.mrf.mxu0
    %v538 = vadd.f32 %v498, %v537
    %v539 = vpop.f32.mrf.mxu0
    %v540 = vpop.f32.mrf.mxu0
    %v541 = vpop.f32.mrf.mxu0
    %542 = vdwg.mxu0
    %543 = vmatprep.subr.bf16.mxu0 0
    %544 = vmatpush1.bf16.xpose.msra.mxu0 %v421
    %545 = vmatprep.subr.bf16.mxu0 0
    %546 = vmatpush1.bf16.xpose.msra.mxu0 %v418
    %547 = vmatprep.subr.bf16.mxu0 0
    %548 = vmatpush1.bf16.xpose.msra.mxu0 %v415
    %549 = vmatprep.subr.bf16.mxu0 0
    %550 = vmatpush1.bf16.xpose.msra.mxu0 %v412
    %551 = vmatprep.subr.bf16.mxu0 0
    %552 = vmatpush1.bf16.xpose.msra.mxu0 %v409
    %553 = vmatprep.subr.bf16.mxu0 0
    %554 = vmatpush1.bf16.xpose.msra.mxu0 %v406
    %555 = vmatprep.subr.bf16.mxu0 0
    %556 = vmatpush1.bf16.xpose.msra.mxu0 %v403
    %557 = vmatprep.subr.bf16.mxu0 0
    %558 = vmatpush1.bf16.xpose.msra.mxu0 %v400
    %559 = vmatprep.subr.bf16.mxu0 0
    %560 = vmatpush2.bf16.xpose.msra.mxu0 0
    %561 = vmatprep.subr.bf16.mxu0 0
    %562 = vmatpush2.bf16.xpose.msra.mxu0 0
    %563 = vmatprep.subr.bf16.mxu0 0
    %564 = vmatpush2.bf16.xpose.msra.mxu0 0
    %565 = vmatprep.subr.bf16.mxu0 0
    %566 = vmatpush2.bf16.xpose.msra.mxu0 0
    %567 = vmatprep.subr.bf16.mxu0 0
    %568 = vmatpush2.bf16.xpose.msra.mxu0 0
    %569 = vmatprep.subr.bf16.mxu0 0
    %570 = vmatpush2.bf16.xpose.msra.mxu0 0
    %571 = vmatprep.subr.bf16.mxu0 0
    %572 = vmatpush2.bf16.xpose.msra.mxu0 0
    %573 = vmatprep.subr.bf16.mxu0 0
    %574 = vmatpush2.bf16.xpose.msra.mxu0 0
    %575 = vmatprep.mubr.bf16.mxu0 0
    %576 = vmatmul.mubr.bf16.gmra.mxu0 %v397
    %v577 = vpop.f32.mrf.mxu0
    %v578 = vadd.f32 %v538, %v577
    %v579 = vpop.f32.mrf.mxu0
    %v580 = vpop.f32.mrf.mxu0
    %v581 = vpop.f32.mrf.mxu0
    %582 = vdwg.mxu0
    %583 = vst [vmem:[#allocation2] sm:$0xff] %v578
    // Predicated region
    $region14: #{tpu_custom_call.1} parent=1 // pred_check
      _
    $region15: #{tpu_custom_call.1} parent=1 // pred_check_branch
      %585 = sbr.rel (0) target = $region17
    $region16: #{tpu_custom_call.1} parent=1 // pred_region
      %s587 = ssub.s32 128, 128
      %588 = vsyncadd [#allocation3], %s587
      %s590 = sshll.u32 [#allocation2], 4
      %s591 = int_to_ptr.vmem [resolvable:$true] %s590
      %593 = dma.vmem_to_hbm [thread:$0]  %s591, 128, %s3, [#allocation3]
    $region17: #{tpu_custom_call.1} parent=1 // pred_fallthru
      _
    // Predicated region
    $region18: #{tpu_custom_call.1} parent=1 // pred_check
      _
    $region19: #{tpu_custom_call.1} parent=1 // pred_check_branch
      %595 = sbr.rel (0) target = $region21
    $region20: #{tpu_custom_call.1} parent=1 // pred_region
      %596 = dma.done [#allocation3], 128
    $region21: #{tpu_custom_call.1} parent=1 // pred_fallthru
      _
    %597 = vsyncpa [#allocation3], 1

</llo_original>
